<compile_context>
chip_gen: v6e
topology: v6e:2x2x1
jax: 0.10.0
libtpu: 0.0.40
codegen_flags: <defaults>
</compile_context>

<pallas_src>
import functools

import jax
import jax.numpy as jnp
from jax.experimental import pallas as pl
from jax.experimental.pallas import tpu as pltpu


def _round_up(x, m):
    return (x + m - 1) // m * m


def _fold_to_lane_block(sq):
    """(tm, tn) f32 -> (8, 128) partial sums using VPU adds only (no XLU)."""
    tm, tn = sq.shape
    part = sq.reshape(tm // 8, 8, tn).sum(axis=0)            # (8, tn)
    if tn > 128:
        part = part.reshape(8, tn // 128, 128).sum(axis=1)   # (8, 128)
    return part


def _pick_k_tiling(K, tm, n_f_streams, itemsize, *,
                   vmem_budget=24 * 1024 * 1024, tk_cap=8192):
    """Largest K tile fitting the VMEM budget, split near-evenly over the grid."""
    fixed = 3 * tm * tm * 4          # f32 accumulator + (double-buffered) target tile
    cap = (vmem_budget - fixed) // (2 * n_f_streams * tm * itemsize)
    cap = max(512, min(tk_cap, cap))
    cap = cap // 128 * 128
    Kp0 = _round_up(K, 128)
    if Kp0 <= cap:
        return Kp0, Kp0
    grid_k = -(-Kp0 // cap)
    tk = _round_up(-(-K // grid_k), 128)
    return tk, tk * grid_k


# --------------- single-tile path: one F stream covers all gram rows ---------------
def _style_loss_single_kernel(f_ref, gt_ref, out_ref, acc_ref, *, inv_norm):
    k = pl.program_id(0)

    @pl.when(k == 0)
    def _():
        acc_ref[...] = jnp.zeros_like(acc_ref)

    f = f_ref[...]
    # (Mp, tk) x (Mp, tk) contracted on K -> (Mp, Mp) gram partial, f32 acc on MXU.
    acc_ref[...] += jax.lax.dot_general(
        f, f, (((1,), (1,)), ((), ())), preferred_element_type=jnp.float32)

    @pl.when(k == pl.num_programs(0) - 1)
    def _():
        diff = acc_ref[...] * inv_norm - gt_ref[...]
        out_ref[...] = _fold_to_lane_block(diff * diff)


# --------------- pair path: upper-triangular gram tiles (large M) ---------------
def _style_loss_pair_kernel(pair_i_ref, pair_j_ref,      # scalar prefetch (SMEM)
                            f_i_ref, f_j_ref, gt_ref,    # VMEM tiles
                            out_ref,                     # (1, 8, 128) per-pair partial
                            acc_ref,                     # (tm, tn) f32 gram scratch
                            *, inv_norm):
    p = pl.program_id(0)
    k = pl.program_id(1)

    @pl.when(k == 0)
    def _():
        acc_ref[...] = jnp.zeros_like(acc_ref)

    acc_ref[...] += jax.lax.dot_general(
        f_i_ref[...], f_j_ref[...], (((1,), (1,)), ((), ())),
        preferred_element_type=jnp.float32)

    @pl.when(k == pl.num_programs(1) - 1)
    def _():
        diff = acc_ref[...] * inv_norm - gt_ref[...]
        part = _fold_to_lane_block(diff * diff)
        # Gram symmetry: an off-diagonal tile also stands in for its transpose.
        w = 2.0 - (pair_i_ref[p] == pair_j_ref[p]).astype(jnp.float32)
        out_ref[0, :, :] = part * w


def style_loss_pallas(x_nchw, target_gram, *,
                      single_block_max=1024, block_m=512,
                      compute_dtype=jnp.bfloat16,
                      vmem_limit_bytes=32 * 1024 * 1024):
    """MSE(gram_matrix(x_nchw), target_gram) — fused gram matmul + reduction."""
    a, b, c, d = x_nchw.shape
    M = a * b
    K = c * d
    inv_norm = 1.0 / float(M * K)
    itemsize = jnp.dtype(compute_dtype).itemsize

    f = x_nchw.reshape(M, K)
    Mp_small = _round_up(M, 128)

    if Mp_small <= single_block_max:
        # --- all gram rows fit in one tile: stream F once (halves HBM traffic) ---
        tm = Mp_small
        tk, Kp = _pick_k_tiling(K, tm, 1, itemsize)
        grid_k = Kp // tk

        fpad = jnp.pad(f, ((0, tm - M), (0, Kp - K))).astype(compute_dtype)
        gt = jnp.pad(target_gram.astype(jnp.float32), ((0, tm - M), (0, tm - M)))

        cost = pl.CostEstimate(
            flops=2 * tm * tm * Kp, transcendentals=0,
            bytes_accessed=tm * Kp * itemsize + tm * tm * 4 + 8 * 128 * 4)

        part = pl.pallas_call(
            functools.partial(_style_loss_single_kernel, inv_norm=inv_norm),
            out_shape=jax.ShapeDtypeStruct((8, 128), jnp.float32),
            grid_spec=pltpu.PrefetchScalarGridSpec(
                num_scalar_prefetch=0,
                grid=(grid_k,),
                in_specs=[
                    pl.BlockSpec((tm, tk), lambda k: (0, k)),   # F (all rows, K chunk)
                    pl.BlockSpec((tm, tm), lambda k: (0, 0)),   # target gram (resident)
                ],
                out_specs=pl.BlockSpec((8, 128), lambda k: (0, 0)),
                scratch_shapes=[pltpu.VMEM((tm, tm), jnp.float32)],
            ),
            compiler_params=pltpu.CompilerParams(
                dimension_semantics=("arbitrary",),
                vmem_limit_bytes=vmem_limit_bytes),
            cost_estimate=cost,
        )(fpad, gt)
        return jnp.sum(part) / float(M * M)

    # --- large M: tiled gram, upper-triangular tile pairs ---
    tm = block_m
    assert tm % 128 == 0, "block_m must be a multiple of 128"
    Mp = _round_up(M, tm)
    tk, Kp = _pick_k_tiling(K, tm, 2, itemsize)
    grid_k = Kp // tk

    fpad = jnp.pad(f, ((0, Mp - M), (0, Kp - K))).astype(compute_dtype)
    gt = jnp.pad(target_gram.astype(jnp.float32), ((0, Mp - M), (0, Mp - M)))

    n_blk = Mp // tm
    pairs = [(i, j) for i in range(n_blk) for j in range(i, n_blk)]
    pair_i = jnp.array([i for i, _ in pairs], dtype=jnp.int32)
    pair_j = jnp.array([j for _, j in pairs], dtype=jnp.int32)
    n_pairs = len(pairs)

    cost = pl.CostEstimate(
        flops=2 * n_pairs * tm * tm * Kp, transcendentals=0,
        bytes_accessed=(n_pairs * grid_k * 2 * tm * tk * itemsize
                        + n_pairs * tm * tm * 4
                        + n_pairs * 8 * 128 * 4))

    partials = pl.pallas_call(
        functools.partial(_style_loss_pair_kernel, inv_norm=inv_norm),
        out_shape=jax.ShapeDtypeStruct((n_pairs, 8, 128), jnp.float32),
        grid_spec=pltpu.PrefetchScalarGridSpec(
            num_scalar_prefetch=2,
            grid=(n_pairs, grid_k),
            in_specs=[
                pl.BlockSpec((tm, tk), lambda p, k, pi, pj: (pi[p], k)),       # F rows (i)
                pl.BlockSpec((tm, tk), lambda p, k, pi, pj: (pj[p], k)),       # F rows (j)
                pl.BlockSpec((tm, tm), lambda p, k, pi, pj: (pi[p], pj[p])),   # target gram tile
            ],
            out_specs=pl.BlockSpec((1, 8, 128), lambda p, k, pi, pj: (p, 0, 0)),
            scratch_shapes=[pltpu.VMEM((tm, tm), jnp.float32)],
        ),
        compiler_params=pltpu.CompilerParams(
            dimension_semantics=("parallel", "arbitrary"),
            vmem_limit_bytes=vmem_limit_bytes),
        cost_estimate=cost,
    )(pair_i, pair_j, fpad, fpad, gt)

    return jnp.sum(partials) / float(M * M)


def gram_matrix_ref(x_nchw):
    """Plain-JAX gram matrix (target setup in __init__ and correctness reference)."""
    a, b, c, d = x_nchw.shape
    f = x_nchw.reshape(a * b, c * d).astype(jnp.float32)
    return (f @ f.T) / float(a * b * c * d)


class StyleLoss:
    """JAX/Pallas analogue of the PyTorch StyleLoss module."""

    def __init__(self, feature_maps):
        # Parameter setup (detached target grams) — plain JAX glue.
        self.feature_maps = {key: gram_matrix_ref(val) for key, val in feature_maps.items()}

    def __call__(self, inputs, layer_name):
        return style_loss_pallas(inputs[layer_name], self.feature_maps[layer_name])


if __name__ == "__main__":
    key = jax.random.PRNGKey(0)
    k_tgt, k_in, k_tgt2, k_in2 = jax.random.split(key, 4)

    def bf16_gram(x):
        a, b, c, d = x.shape
        fb = x.reshape(a * b, c * d).astype(jnp.bfloat16)
        return jax.lax.dot_general(
            fb, fb, (((1,), (1,)), ((), ())),
            preferred_element_type=jnp.float32) / float(a * b * c * d)

    # --- case 1: single-tile fast path (batch=2, channels=4, 16x16 -> F is (8, 256)).
    shape1 = (2, 4, 16, 16)
    target_fm = jax.random.normal(k_tgt, shape1, dtype=jnp.float32)
    input_fm = jax.random.normal(k_in, shape1, dtype=jnp.float32)

    layer = "conv_1"
    module = StyleLoss({layer: target_fm})
    loss1 = jax.block_until_ready(module({layer: input_fm}, layer))

    g_tgt1 = module.feature_maps[layer]
    ref1_f32 = jnp.mean((gram_matrix_ref(input_fm) - g_tgt1) ** 2)
    ref1_bf16 = jnp.mean((bf16_gram(input_fm) - g_tgt1) ** 2)
    assert jnp.allclose(loss1, ref1_bf16, rtol=1e-2, atol=1e-7), (loss1, ref1_bf16)
    assert jnp.allclose(loss1, ref1_f32, rtol=2e-2, atol=1e-6), (loss1, ref1_f32)

    # --- case 2: force the tiled pair path at a small shape (F is (160, 64)).
    shape2 = (2, 80, 8, 8)
    target_fm2 = jax.random.normal(k_tgt2, shape2, dtype=jnp.float32)
    input_fm2 = jax.random.normal(k_in2, shape2, dtype=jnp.float32)
    g_tgt2 = gram_matrix_ref(target_fm2)

    loss2 = jax.block_until_ready(
        style_loss_pallas(input_fm2, g_tgt2, single_block_max=128, block_m=128))

    ref2_f32 = jnp.mean((gram_matrix_ref(input_fm2) - g_tgt2) ** 2)
    ref2_bf16 = jnp.mean((bf16_gram(input_fm2) - g_tgt2) ** 2)
    assert jnp.allclose(loss2, ref2_bf16, rtol=1e-2, atol=1e-7), (loss2, ref2_bf16)
    assert jnp.allclose(loss2, ref2_f32, rtol=2e-2, atol=1e-6), (loss2, ref2_f32)

    print("KERNEL_OK")
</pallas_src>

<mosaic_0001>
module attributes {stable_mosaic.version = 11 : i64} {
  func.func @_style_loss_single_kernel(%arg0: i32, %arg1: memref<128x256xbf16, #tpu.memory_space<vmem>>, %arg2: memref<128x128xf32, #tpu.memory_space<vmem>>, %arg3: memref<8x128xf32, #tpu.memory_space<vmem>>, %arg4: memref<128x128xf32, #tpu.memory_space<vmem>>) attributes {dimension_semantics = [#tpu.dimension_semantics<arbitrary>], iteration_bounds = array<i64: 1>, scalar_prefetch = 0 : i64, scratch_operands = 1 : i64, tpu.core_type = #tpu.core_type<tc>, window_params = [{transform_indices = @transform_0, window_bounds = array<i64: 128, 256>}, {pipeline_mode = #tpu.pipeline_mode<synchronous>, transform_indices = @transform_1, window_bounds = array<i64: 128, 128>}, {pipeline_mode = #tpu.pipeline_mode<synchronous>, transform_indices = @transform_2, window_bounds = array<i64: 8, 128>}]} {
    %c0_i32 = arith.constant 0 : i32
    %0 = arith.cmpi eq, %arg0, %c0_i32 : i32
    %1 = arith.extui %0 : i1 to i32
    %c0_i32_0 = arith.constant 0 : i32
    %2 = arith.cmpi ne, %1, %c0_i32_0 : i32
    scf.if %2 {
      %cst_8 = arith.constant 0.000000e+00 : f32
      %11 = vector.broadcast %cst_8 : f32 to vector<128x128xf32>
      %c0_9 = arith.constant 0 : index
      %c0_10 = arith.constant 0 : index
      %12 = vector.load %arg4[%c0_9, %c0_10] : memref<128x128xf32, #tpu.memory_space<vmem>>, vector<128x128xf32>
      tpu.vector_store %arg4[%c0_9, %c0_10], %11 {strides = array<i32>} : memref<128x128xf32, #tpu.memory_space<vmem>>, vector<128x128xf32>,
    } else {
    }
    %c0 = arith.constant 0 : index
    %c0_1 = arith.constant 0 : index
    %3 = vector.load %arg1[%c0, %c0_1] : memref<128x256xbf16, #tpu.memory_space<vmem>>, vector<128x256xbf16>
    %c0_2 = arith.constant 0 : index
    %c0_3 = arith.constant 0 : index
    %4 = vector.load %arg4[%c0_2, %c0_3] : memref<128x128xf32, #tpu.memory_space<vmem>>, vector<128x128xf32>
    %cst = arith.constant dense<0.000000e+00> : vector<128x128xf32>
    %5 = tpu.matmul %3, %3, %cst {dimension_numbers = #tpu.dot_dimension_numbers<[1], [1], [0], [0], [0, 0, 1, 0], [], []>} : vector<128x256xbf16>, vector<128x256xbf16>, vector<128x128xf32> -> vector<128x128xf32>
    %6 = arith.addf %4, %5 : vector<128x128xf32>
    %c0_4 = arith.constant 0 : index
    %c0_5 = arith.constant 0 : index
    %7 = vector.load %arg4[%c0_4, %c0_5] : memref<128x128xf32, #tpu.memory_space<vmem>>, vector<128x128xf32>
    tpu.vector_store %arg4[%c0_4, %c0_5], %6 {strides = array<i32>} : memref<128x128xf32, #tpu.memory_space<vmem>>, vector<128x128xf32>,
    %c0_i32_6 = arith.constant 0 : i32
    %8 = arith.cmpi eq, %arg0, %c0_i32_6 : i32
    %9 = arith.extui %8 : i1 to i32
    %c0_i32_7 = arith.constant 0 : i32
    %10 = arith.cmpi ne, %9, %c0_i32_7 : i32
    scf.if %10 {
      %c0_8 = arith.constant 0 : index
      %c0_9 = arith.constant 0 : index
      %11 = vector.load %arg4[%c0_8, %c0_9] : memref<128x128xf32, #tpu.memory_space<vmem>>, vector<128x128xf32>
      %cst_10 = arith.constant 4.8828125E-4 : f32
      %12 = vector.broadcast %cst_10 : f32 to vector<128x128xf32>
      %13 = arith.mulf %11, %12 : vector<128x128xf32>
      %c0_11 = arith.constant 0 : index
      %c0_12 = arith.constant 0 : index
      %14 = vector.load %arg2[%c0_11, %c0_12] : memref<128x128xf32, #tpu.memory_space<vmem>>, vector<128x128xf32>
      %15 = arith.subf %13, %14 : vector<128x128xf32>
      %16 = arith.mulf %15, %15 : vector<128x128xf32>
      %17 = vector.shape_cast %16 : vector<128x128xf32> to vector<16x8x128xf32>
      %cst_13 = arith.constant dense<0.000000e+00> : vector<8x128xf32>
      %18 = vector.multi_reduction <add>, %17, %cst_13 [0] : vector<16x8x128xf32> to vector<8x128xf32>
      %c0_14 = arith.constant 0 : index
      %c0_15 = arith.constant 0 : index
      %19 = vector.load %arg3[%c0_14, %c0_15] : memref<8x128xf32, #tpu.memory_space<vmem>>, vector<8x128xf32>
      tpu.vector_store %arg3[%c0_14, %c0_15], %18 {strides = array<i32>} : memref<8x128xf32, #tpu.memory_space<vmem>>, vector<8x128xf32>,
    } else {
    }
    return
  }
  func.func @transform_0(%arg0: i32) -> (i32, i32) {
    %c0_i32 = arith.constant 0 : i32
    %c0_i32_0 = arith.constant 0 : i32
    return %c0_i32, %arg0 : i32, i32
  }
  func.func @transform_1(%arg0: i32) -> (i32, i32) {
    %c0_i32 = arith.constant 0 : i32
    %c0_i32_0 = arith.constant 0 : i32
    %c0_i32_1 = arith.constant 0 : i32
    return %c0_i32, %c0_i32_0 : i32, i32
  }
  func.func @transform_2(%arg0: i32) -> (i32, i32) {
    %c0_i32 = arith.constant 0 : i32
    %c0_i32_0 = arith.constant 0 : i32
    %c0_i32_1 = arith.constant 0 : i32
    return %c0_i32, %c0_i32_0 : i32, i32
  }
}

</mosaic_0001>

<llo_original>
// kernel: tpu_custom_call.1
$region0: #{tpu_custom_call.1}
  #allocation0 [shape = 'u32[]', space=smem, size = 0x4, offset = 0x4, fixed_abs, tag = 'smem constant byte address 0x4 - core index']
  #allocation1 [shape = 'u32[144,128]{1,0:T(1,128)}', space=vmem, size = 0x12000, scoped, tag = 'internal scratch']
  #allocation2 [shape = 'f32[128,128]{1,0:T(8,128)}', space=vmem, size = 0x10000, scoped, tag = 'scratch operand']
  %s0 = inlined_call_operand.hbm [shape: bf16[128,256], index: 0, kind: input, shape index: {}]
  %s1 = inlined_call_operand.hbm [shape: f32[128,128], index: 1, kind: input, shape index: {}]
  %s2 = inlined_call_operand.hbm [shape: f32[8,128], index: 2, kind: output, shape index: {}]
  %s3 = sld [smem:[#allocation0]]
  $region34: #{tpu_custom_call.1} parent=0
    _
  %s5 = ssub.s32 1, %s3
  %s6 = scalar_select 0, %s5, %s3
  $region1: #{tpu_custom_call.1} parent=0
    #allocation3 [shape = 'u8[65536]{0}', space=vmem, size = 0x10000, scoped, tag = 'input window, operand 0, single buffered']
    #allocation4 [shape = 's32[1]{0}', space=sflag, size = 0x4, scoped, tag = 'scoped memory for tpu_custom_call.1']
    #allocation5 [shape = 's32[1]{0}', space=sflag, size = 0x4, scoped, tag = 'scoped memory for tpu_custom_call.1']
    #allocation6 [shape = 'u8[65536]{0}', space=vmem, size = 0x10000, scoped, tag = 'input window, operand 1, single buffered']
    #allocation7 [shape = 's32[1]{0}', space=sflag, size = 0x4, scoped, tag = 'scoped memory for tpu_custom_call.1']
    #allocation8 [shape = 'u8[4096]{0}', space=vmem, size = 0x1000, scoped, tag = 'output window, operand 0, single buffered']
    %7 = vsyncpa [#allocation4], 0
    %8 = vsyncpa [#allocation7], 0
    %9 = vsyncpa [#allocation5], 0
    // Predicated region
    $region2: #{tpu_custom_call.1} parent=1 // pred_check
      _
    $region3: #{tpu_custom_call.1} parent=1 // pred_check_branch
      %11 = sbr.rel (0) target = $region5
    $region4: #{tpu_custom_call.1} parent=1 // pred_region
      %s13 = ssub.s32 2048, 2048
      %14 = vsyncadd [#allocation4], %s13
      %s15 = sshll.u32 [#allocation3], 4
      %s16 = int_to_ptr.vmem [resolvable:$true] %s15
      %21 = dma.hbm_to_vmem [thread:$0]  %s0, 2048, %s16, [#allocation4], 128, 128, 8
    $region5: #{tpu_custom_call.1} parent=1 // pred_fallthru
      _
    // Predicated region
    $region6: #{tpu_custom_call.1} parent=1 // pred_check
      _
    $region7: #{tpu_custom_call.1} parent=1 // pred_check_branch
      %23 = sbr.rel (0) target = $region9
    $region8: #{tpu_custom_call.1} parent=1 // pred_region
      %s25 = ssub.s32 2048, 2048
      %26 = vsyncadd [#allocation7], %s25
      %s27 = sshll.u32 [#allocation6], 4
      %s28 = int_to_ptr.vmem [resolvable:$true] %s27
      %33 = dma.hbm_to_vmem [thread:$0]  %s1, 2048, %s28, [#allocation7], 128, 128, 8
    $region9: #{tpu_custom_call.1} parent=1 // pred_fallthru
      _
    // Predicated region
    $region10: #{tpu_custom_call.1} parent=1 // pred_check
      _
    $region11: #{tpu_custom_call.1} parent=1 // pred_check_branch
      %35 = sbr.rel (0) target = $region13
    $region12: #{tpu_custom_call.1} parent=1 // pred_region
      %36 = dma.done [#allocation4], 2048
    $region13: #{tpu_custom_call.1} parent=1 // pred_fallthru
      _
    // Predicated region
    $region14: #{tpu_custom_call.1} parent=1 // pred_check
      _
    $region15: #{tpu_custom_call.1} parent=1 // pred_check_branch
      %38 = sbr.rel (0) target = $region17
    $region16: #{tpu_custom_call.1} parent=1 // pred_region
      %39 = dma.done [#allocation7], 2048
    $region17: #{tpu_custom_call.1} parent=1 // pred_fallthru
      _
    %p41 = scmp.eq.s32.totalorder 0, 0
    // Predicated region
    $region18: #{tpu_custom_call.1} parent=1 // pred_check
      %p42 = pneg %p41
    $region19: #{tpu_custom_call.1} parent=1 // pred_check_branch
      %44 = sbr.rel (%p42) target = $region21
    $region20: #{tpu_custom_call.1} parent=1 // pred_region
      %45 = vst [vmem:[#allocation2] sm:$0xff] 0.0
      %46 = vst [vmem:[#allocation2 + $0x8] sm:$0xff] 0.0
      %47 = vst [vmem:[#allocation2 + $0x10] sm:$0xff] 0.0
      %48 = vst [vmem:[#allocation2 + $0x18] sm:$0xff] 0.0
      %49 = vst [vmem:[#allocation2 + $0x20] sm:$0xff] 0.0
      %50 = vst [vmem:[#allocation2 + $0x28] sm:$0xff] 0.0
      %51 = vst [vmem:[#allocation2 + $0x30] sm:$0xff] 0.0
      %52 = vst [vmem:[#allocation2 + $0x38] sm:$0xff] 0.0
      %53 = vst [vmem:[#allocation2 + $0x40] sm:$0xff] 0.0
      %54 = vst [vmem:[#allocation2 + $0x48] sm:$0xff] 0.0
      %55 = vst [vmem:[#allocation2 + $0x50] sm:$0xff] 0.0
      %56 = vst [vmem:[#allocation2 + $0x58] sm:$0xff] 0.0
      %57 = vst [vmem:[#allocation2 + $0x60] sm:$0xff] 0.0
      %58 = vst [vmem:[#allocation2 + $0x68] sm:$0xff] 0.0
      %59 = vst [vmem:[#allocation2 + $0x70] sm:$0xff] 0.0
      %60 = vst [vmem:[#allocation2 + $0x78] sm:$0xff] 0.0
    $region21: #{tpu_custom_call.1} parent=1 // pred_fallthru
      _
    %v61 = vld [vmem:[#allocation3] sm:$0xff]
    %v62 = vld [vmem:[#allocation3 + $0x8] sm:$0xff]
    %v63 = vld [vmem:[#allocation3 + $0x10] sm:$0xff]
    %v64 = vld [vmem:[#allocation3 + $0x18] sm:$0xff]
    %v65 = vld [vmem:[#allocation3 + $0x20] sm:$0xff]
    %v66 = vld [vmem:[#allocation3 + $0x28] sm:$0xff]
    %v67 = vld [vmem:[#allocation3 + $0x30] sm:$0xff]
    %v68 = vld [vmem:[#allocation3 + $0x38] sm:$0xff]
    %v69 = vld [vmem:[#allocation3 + $0x40] sm:$0xff]
    %v70 = vld [vmem:[#allocation3 + $0x48] sm:$0xff]
    %v71 = vld [vmem:[#allocation3 + $0x50] sm:$0xff]
    %v72 = vld [vmem:[#allocation3 + $0x58] sm:$0xff]
    %v73 = vld [vmem:[#allocation3 + $0x60] sm:$0xff]
    %v74 = vld [vmem:[#allocation3 + $0x68] sm:$0xff]
    %v75 = vld [vmem:[#allocation3 + $0x70] sm:$0xff]
    %v76 = vld [vmem:[#allocation3 + $0x78] sm:$0xff]
    %v77 = vld [vmem:[#allocation2] sm:$0xff]
    %v78 = vld [vmem:[#allocation2 + $0x8] sm:$0xff]
    %v79 = vld [vmem:[#allocation2 + $0x10] sm:$0xff]
    %v80 = vld [vmem:[#allocation2 + $0x18] sm:$0xff]
    %v81 = vld [vmem:[#allocation2 + $0x20] sm:$0xff]
    %v82 = vld [vmem:[#allocation2 + $0x28] sm:$0xff]
    %v83 = vld [vmem:[#allocation2 + $0x30] sm:$0xff]
    %v84 = vld [vmem:[#allocation2 + $0x38] sm:$0xff]
    %v85 = vld [vmem:[#allocation2 + $0x40] sm:$0xff]
    %v86 = vld [vmem:[#allocation2 + $0x48] sm:$0xff]
    %v87 = vld [vmem:[#allocation2 + $0x50] sm:$0xff]
    %v88 = vld [vmem:[#allocation2 + $0x58] sm:$0xff]
    %v89 = vld [vmem:[#allocation2 + $0x60] sm:$0xff]
    %v90 = vld [vmem:[#allocation2 + $0x68] sm:$0xff]
    %v91 = vld [vmem:[#allocation2 + $0x70] sm:$0xff]
    %v92 = vld [vmem:[#allocation2 + $0x78] sm:$0xff]
    %v109 = vunpack.c.l.b16 %v61
    %v110 = vunpack.c.h.b16 %v61
    %v111 = vunpack.c.l.b16 %v62
    %v112 = vunpack.c.h.b16 %v62
    %v113 = vunpack.c.l.b16 %v63
    %v114 = vunpack.c.h.b16 %v63
    %v115 = vunpack.c.l.b16 %v64
    %v116 = vunpack.c.h.b16 %v64
    %v117 = vunpack.c.l.b16 %v65
    %v118 = vunpack.c.h.b16 %v65
    %v119 = vunpack.c.l.b16 %v66
    %v120 = vunpack.c.h.b16 %v66
    %v121 = vunpack.c.l.b16 %v67
    %v122 = vunpack.c.h.b16 %v67
    %v123 = vunpack.c.l.b16 %v68
    %v124 = vunpack.c.h.b16 %v68
    %v125 = vunpack.c.l.b16 %v69
    %v126 = vunpack.c.h.b16 %v69
    %v127 = vunpack.c.l.b16 %v70
    %v128 = vunpack.c.h.b16 %v70
    %v129 = vunpack.c.l.b16 %v71
    %v130 = vunpack.c.h.b16 %v71
    %v131 = vunpack.c.l.b16 %v72
    %v132 = vunpack.c.h.b16 %v72
    %v133 = vunpack.c.l.b16 %v73
    %v134 = vunpack.c.h.b16 %v73
    %v135 = vunpack.c.l.b16 %v74
    %v136 = vunpack.c.h.b16 %v74
    %v137 = vunpack.c.l.b16 %v75
    %v138 = vunpack.c.h.b16 %v75
    %v139 = vunpack.c.l.b16 %v76
    %v140 = vunpack.c.h.b16 %v76
    %v141 = vpack.c.b16 %v111, %v109
    %v142 = vpack.c.b16 %v112, %v110
    %v143 = vpack.c.b16 %v115, %v113
    %v144 = vpack.c.b16 %v116, %v114
    %v145 = vpack.c.b16 %v119, %v117
    %v146 = vpack.c.b16 %v120, %v118
    %v147 = vpack.c.b16 %v123, %v121
    %v148 = vpack.c.b16 %v124, %v122
    %v149 = vpack.c.b16 %v127, %v125
    %v150 = vpack.c.b16 %v128, %v126
    %v151 = vpack.c.b16 %v131, %v129
    %v152 = vpack.c.b16 %v132, %v130
    %v153 = vpack.c.b16 %v135, %v133
    %v154 = vpack.c.b16 %v136, %v134
    %v155 = vpack.c.b16 %v139, %v137
    %v156 = vpack.c.b16 %v140, %v138
    %173 = vmatprep.subr.bf16.mxu0 %v156
    %174 = vmatpush1.bf16.xpose.msra.mxu0 %v155
    %175 = vmatprep.subr.bf16.mxu0 %v154
    %176 = vmatpush1.bf16.xpose.msra.mxu0 %v153
    %177 = vmatprep.subr.bf16.mxu0 %v152
    %178 = vmatpush1.bf16.xpose.msra.mxu0 %v151
    %179 = vmatprep.subr.bf16.mxu0 %v150
    %180 = vmatpush1.bf16.xpose.msra.mxu0 %v149
    %181 = vmatprep.subr.bf16.mxu0 %v148
    %182 = vmatpush1.bf16.xpose.msra.mxu0 %v147
    %183 = vmatprep.subr.bf16.mxu0 %v146
    %184 = vmatpush1.bf16.xpose.msra.mxu0 %v145
    %185 = vmatprep.subr.bf16.mxu0 %v144
    %186 = vmatpush1.bf16.xpose.msra.mxu0 %v143
    %187 = vmatprep.subr.bf16.mxu0 %v142
    %188 = vmatpush1.bf16.xpose.msra.mxu0 %v141
    %189 = vmatprep.subr.bf16.mxu0 0
    %190 = vmatpush2.bf16.xpose.msra.mxu0 0
    %191 = vmatprep.subr.bf16.mxu0 0
    %192 = vmatpush2.bf16.xpose.msra.mxu0 0
    %193 = vmatprep.subr.bf16.mxu0 0
    %194 = vmatpush2.bf16.xpose.msra.mxu0 0
    %195 = vmatprep.subr.bf16.mxu0 0
    %196 = vmatpush2.bf16.xpose.msra.mxu0 0
    %197 = vmatprep.subr.bf16.mxu0 0
    %198 = vmatpush2.bf16.xpose.msra.mxu0 0
    %199 = vmatprep.subr.bf16.mxu0 0
    %200 = vmatpush2.bf16.xpose.msra.mxu0 0
    %201 = vmatprep.subr.bf16.mxu0 0
    %202 = vmatpush2.bf16.xpose.msra.mxu0 0
    %203 = vmatprep.subr.bf16.mxu0 0
    %204 = vmatpush2.bf16.xpose.msra.mxu0 0
    %205 = vmatprep.mubr.bf16.mxu0 %v142
    %206 = vmatmul.mubr.bf16.gmra.mxu0 %v141
    %v207 = vpop.f32.mrf.mxu0
    %v208 = vadd.f32 0.0, %v207
    %v209 = vpop.f32.mrf.mxu0
    %v210 = vpop.f32.mrf.mxu0
    %v211 = vadd.f32 0.0, %v210
    %v212 = vpop.f32.mrf.mxu0
    %213 = vmatprep.mubr.bf16.mxu0 %v144
    %214 = vmatmul.mubr.bf16.gmra.mxu0 %v143
    %v215 = vpop.f32.mrf.mxu0
    %v216 = vadd.f32 0.0, %v215
    %v217 = vpop.f32.mrf.mxu0
    %v218 = vpop.f32.mrf.mxu0
    %v219 = vadd.f32 0.0, %v218
    %v220 = vpop.f32.mrf.mxu0
    %221 = vmatprep.mubr.bf16.mxu0 %v146
    %222 = vmatmul.mubr.bf16.gmra.mxu0 %v145
    %v223 = vpop.f32.mrf.mxu0
    %v224 = vadd.f32 0.0, %v223
    %v225 = vpop.f32.mrf.mxu0
    %v226 = vpop.f32.mrf.mxu0
    %v227 = vadd.f32 0.0, %v226
    %v228 = vpop.f32.mrf.mxu0
    %229 = vmatprep.mubr.bf16.mxu0 %v148
    %230 = vmatmul.mubr.bf16.gmra.mxu0 %v147
    %v231 = vpop.f32.mrf.mxu0
    %v232 = vadd.f32 0.0, %v231
    %v233 = vpop.f32.mrf.mxu0
    %v234 = vpop.f32.mrf.mxu0
    %v235 = vadd.f32 0.0, %v234
    %v236 = vpop.f32.mrf.mxu0
    %237 = vmatprep.mubr.bf16.mxu0 %v150
    %238 = vmatmul.mubr.bf16.gmra.mxu0 %v149
    %v239 = vpop.f32.mrf.mxu0
    %v240 = vadd.f32 0.0, %v239
    %v241 = vpop.f32.mrf.mxu0
    %v242 = vpop.f32.mrf.mxu0
    %v243 = vadd.f32 0.0, %v242
    %v244 = vpop.f32.mrf.mxu0
    %245 = vmatprep.mubr.bf16.mxu0 %v152
    %246 = vmatmul.mubr.bf16.gmra.mxu0 %v151
    %v247 = vpop.f32.mrf.mxu0
    %v248 = vadd.f32 0.0, %v247
    %v249 = vpop.f32.mrf.mxu0
    %v250 = vpop.f32.mrf.mxu0
    %v251 = vadd.f32 0.0, %v250
    %v252 = vpop.f32.mrf.mxu0
    %253 = vmatprep.mubr.bf16.mxu0 %v154
    %254 = vmatmul.mubr.bf16.gmra.mxu0 %v153
    %v255 = vpop.f32.mrf.mxu0
    %v256 = vadd.f32 0.0, %v255
    %v257 = vpop.f32.mrf.mxu0
    %v258 = vpop.f32.mrf.mxu0
    %v259 = vadd.f32 0.0, %v258
    %v260 = vpop.f32.mrf.mxu0
    %261 = vmatprep.mubr.bf16.mxu0 %v156
    %262 = vmatmul.mubr.bf16.gmra.mxu0 %v155
    %v263 = vpop.f32.mrf.mxu0
    %v264 = vadd.f32 0.0, %v263
    %v265 = vpop.f32.mrf.mxu0
    %v266 = vpop.f32.mrf.mxu0
    %v267 = vadd.f32 0.0, %v266
    %v268 = vpop.f32.mrf.mxu0
    %269 = vdwg.mxu0
    %v270 = vadd.f32 %v77, %v208
    %v271 = vadd.f32 %v78, %v211
    %v272 = vadd.f32 %v79, %v216
    %v273 = vadd.f32 %v80, %v219
    %v274 = vadd.f32 %v81, %v224
    %v275 = vadd.f32 %v82, %v227
    %v276 = vadd.f32 %v83, %v232
    %v277 = vadd.f32 %v84, %v235
    %v278 = vadd.f32 %v85, %v240
    %v279 = vadd.f32 %v86, %v243
    %v280 = vadd.f32 %v87, %v248
    %v281 = vadd.f32 %v88, %v251
    %v282 = vadd.f32 %v89, %v256
    %v283 = vadd.f32 %v90, %v259
    %v284 = vadd.f32 %v91, %v264
    %v285 = vadd.f32 %v92, %v267
    %286 = vst [vmem:[#allocation2] sm:$0xff] %v270
    %287 = vst [vmem:[#allocation2 + $0x8] sm:$0xff] %v271
    %288 = vst [vmem:[#allocation2 + $0x10] sm:$0xff] %v272
    %289 = vst [vmem:[#allocation2 + $0x18] sm:$0xff] %v273
    %290 = vst [vmem:[#allocation2 + $0x20] sm:$0xff] %v274
    %291 = vst [vmem:[#allocation2 + $0x28] sm:$0xff] %v275
    %292 = vst [vmem:[#allocation2 + $0x30] sm:$0xff] %v276
    %293 = vst [vmem:[#allocation2 + $0x38] sm:$0xff] %v277
    %294 = vst [vmem:[#allocation2 + $0x40] sm:$0xff] %v278
    %295 = vst [vmem:[#allocation2 + $0x48] sm:$0xff] %v279
    %296 = vst [vmem:[#allocation2 + $0x50] sm:$0xff] %v280
    %297 = vst [vmem:[#allocation2 + $0x58] sm:$0xff] %v281
    %298 = vst [vmem:[#allocation2 + $0x60] sm:$0xff] %v282
    %299 = vst [vmem:[#allocation2 + $0x68] sm:$0xff] %v283
    %300 = vst [vmem:[#allocation2 + $0x70] sm:$0xff] %v284
    %301 = vst [vmem:[#allocation2 + $0x78] sm:$0xff] %v285
    // Predicated region
    $region22: #{tpu_custom_call.1} parent=1 // pred_check
      %p302 = pneg %p41
    $region23: #{tpu_custom_call.1} parent=1 // pred_check_branch
      %304 = sbr.rel (%p302) target = $region25
    $region24: #{tpu_custom_call.1} parent=1 // pred_region
      %v305 = vld [vmem:[#allocation2] sm:$0xff]
      %v306 = vld [vmem:[#allocation2 + $0x8] sm:$0xff]
      %v307 = vld [vmem:[#allocation2 + $0x10] sm:$0xff]
      %v308 = vld [vmem:[#allocation2 + $0x18] sm:$0xff]
      %v309 = vld [vmem:[#allocation2 + $0x20] sm:$0xff]
      %v310 = vld [vmem:[#allocation2 + $0x28] sm:$0xff]
      %v311 = vld [vmem:[#allocation2 + $0x30] sm:$0xff]
      %v312 = vld [vmem:[#allocation2 + $0x38] sm:$0xff]
      %v313 = vld [vmem:[#allocation2 + $0x40] sm:$0xff]
      %v314 = vld [vmem:[#allocation2 + $0x48] sm:$0xff]
      %v315 = vld [vmem:[#allocation2 + $0x50] sm:$0xff]
      %v316 = vld [vmem:[#allocation2 + $0x58] sm:$0xff]
      %v317 = vld [vmem:[#allocation2 + $0x60] sm:$0xff]
      %v318 = vld [vmem:[#allocation2 + $0x68] sm:$0xff]
      %v319 = vld [vmem:[#allocation2 + $0x70] sm:$0xff]
      %v320 = vld [vmem:[#allocation2 + $0x78] sm:$0xff]
      %v321 = vmul.f32 %v305, 0.00048828125
      %v322 = vmul.f32 %v306, 0.00048828125
      %v323 = vmul.f32 %v307, 0.00048828125
      %v324 = vmul.f32 %v308, 0.00048828125
      %v325 = vmul.f32 %v309, 0.00048828125
      %v326 = vmul.f32 %v310, 0.00048828125
      %v327 = vmul.f32 %v311, 0.00048828125
      %v328 = vmul.f32 %v312, 0.00048828125
      %v329 = vmul.f32 %v313, 0.00048828125
      %v330 = vmul.f32 %v314, 0.00048828125
      %v331 = vmul.f32 %v315, 0.00048828125
      %v332 = vmul.f32 %v316, 0.00048828125
      %v333 = vmul.f32 %v317, 0.00048828125
      %v334 = vmul.f32 %v318, 0.00048828125
      %v335 = vmul.f32 %v319, 0.00048828125
      %v336 = vmul.f32 %v320, 0.00048828125
      %v337 = vld [vmem:[#allocation6] sm:$0xff]
      %v338 = vld [vmem:[#allocation6 + $0x8] sm:$0xff]
      %v339 = vld [vmem:[#allocation6 + $0x10] sm:$0xff]
      %v340 = vld [vmem:[#allocation6 + $0x18] sm:$0xff]
      %v341 = vld [vmem:[#allocation6 + $0x20] sm:$0xff]
      %v342 = vld [vmem:[#allocation6 + $0x28] sm:$0xff]
      %v343 = vld [vmem:[#allocation6 + $0x30] sm:$0xff]
      %v344 = vld [vmem:[#allocation6 + $0x38] sm:$0xff]
      %v345 = vld [vmem:[#allocation6 + $0x40] sm:$0xff]
      %v346 = vld [vmem:[#allocation6 + $0x48] sm:$0xff]
      %v347 = vld [vmem:[#allocation6 + $0x50] sm:$0xff]
      %v348 = vld [vmem:[#allocation6 + $0x58] sm:$0xff]
      %v349 = vld [vmem:[#allocation6 + $0x60] sm:$0xff]
      %v350 = vld [vmem:[#allocation6 + $0x68] sm:$0xff]
      %v351 = vld [vmem:[#allocation6 + $0x70] sm:$0xff]
      %v352 = vld [vmem:[#allocation6 + $0x78] sm:$0xff]
      %v353 = vsub.f32 %v321, %v337
      %v354 = vsub.f32 %v322, %v338
      %v355 = vsub.f32 %v323, %v339
      %v356 = vsub.f32 %v324, %v340
      %v357 = vsub.f32 %v325, %v341
      %v358 = vsub.f32 %v326, %v342
      %v359 = vsub.f32 %v327, %v343
      %v360 = vsub.f32 %v328, %v344
      %v361 = vsub.f32 %v329, %v345
      %v362 = vsub.f32 %v330, %v346
      %v363 = vsub.f32 %v331, %v347
      %v364 = vsub.f32 %v332, %v348
      %v365 = vsub.f32 %v333, %v349
      %v366 = vsub.f32 %v334, %v350
      %v367 = vsub.f32 %v335, %v351
      %v368 = vsub.f32 %v336, %v352
      %v369 = vmul.f32 %v353, %v353
      %v370 = vmul.f32 %v354, %v354
      %v371 = vmul.f32 %v355, %v355
      %v372 = vmul.f32 %v356, %v356
      %v373 = vmul.f32 %v357, %v357
      %v374 = vmul.f32 %v358, %v358
      %v375 = vmul.f32 %v359, %v359
      %v376 = vmul.f32 %v360, %v360
      %v377 = vmul.f32 %v361, %v361
      %v378 = vmul.f32 %v362, %v362
      %v379 = vmul.f32 %v363, %v363
      %v380 = vmul.f32 %v364, %v364
      %v381 = vmul.f32 %v365, %v365
      %v382 = vmul.f32 %v366, %v366
      %v383 = vmul.f32 %v367, %v367
      %v384 = vmul.f32 %v368, %v368
      %v385 = vadd.f32 %v369, %v370
      %v386 = vadd.f32 %v385, %v371
      %v387 = vadd.f32 %v386, %v372
      %v388 = vadd.f32 %v387, %v373
      %v389 = vadd.f32 %v388, %v374
      %v390 = vadd.f32 %v389, %v375
      %v391 = vadd.f32 %v390, %v376
      %v392 = vadd.f32 %v391, %v377
      %v393 = vadd.f32 %v392, %v378
      %v394 = vadd.f32 %v393, %v379
      %v395 = vadd.f32 %v394, %v380
      %v396 = vadd.f32 %v395, %v381
      %v397 = vadd.f32 %v396, %v382
      %v398 = vadd.f32 %v397, %v383
      %v399 = vadd.f32 %v398, %v384
      %400 = vst [vmem:[#allocation8] sm:$0xff] %v399
    $region25: #{tpu_custom_call.1} parent=1 // pred_fallthru
      _
    // Predicated region
    $region26: #{tpu_custom_call.1} parent=1 // pred_check
      _
    $region27: #{tpu_custom_call.1} parent=1 // pred_check_branch
      %402 = sbr.rel (0) target = $region29
    $region28: #{tpu_custom_call.1} parent=1 // pred_region
      %s404 = ssub.s32 128, 128
      %405 = vsyncadd [#allocation5], %s404
      %s407 = sshll.u32 [#allocation8], 4
      %s408 = int_to_ptr.vmem [resolvable:$true] %s407
      %410 = dma.vmem_to_hbm [thread:$0]  %s408, 128, %s2, [#allocation5]
    $region29: #{tpu_custom_call.1} parent=1 // pred_fallthru
      _
    // Predicated region
    $region30: #{tpu_custom_call.1} parent=1 // pred_check
      _
    $region31: #{tpu_custom_call.1} parent=1 // pred_check_branch
      %412 = sbr.rel (0) target = $region33
    $region32: #{tpu_custom_call.1} parent=1 // pred_region
      %413 = dma.done [#allocation5], 128
    $region33: #{tpu_custom_call.1} parent=1 // pred_fallthru
      _
    %414 = vsyncpa [#allocation4], 1
    %415 = vsyncpa [#allocation7], 1
    %416 = vsyncpa [#allocation5], 1

</llo_original>
